<compile_context>
chip_gen: v7x
topology: tpu7x:2x2x1
jax: 0.10.0
libtpu: 0.0.40
codegen_flags: <defaults>
</compile_context>

<pallas_src>
import jax
import jax.numpy as jnp
from jax.experimental import pallas as pl
from jax.experimental.pallas import tpu as pltpu

P = 1000       # hidden "basis" width of DeepONet (hard-coded 1000 in the module)
LANE = 128


def _round_up(x, m):
    return ((x + m - 1) // m) * m


def deeponet_kernel(
    branch_ref,   # (bf, TB)   batch-in-lanes tile
    trunk_ref,    # (tf, TB)   batch-in-lanes tile
    wt0_ref,      # (C, tf)    resident
    bt0_ref,      # (C, 1)     resident
    whid_ref,     # (3, C, C)  resident (3 square hidden layers, (out,in) layout)
    bhid_ref,     # (3, C, 1)  resident
    gmat_ref,     # (C, bf)    resident:  ((wb*llw) @ wt4^T)^T
    gvec_ref,     # (1, bf)    resident:  ((wb*llw) @ bt4^T)^T
    out_ref,      # (1, TB)    lane-dense output row
):
    f32 = jnp.float32
    xb = branch_ref[...]          # (bf, TB)
    xt = trunk_ref[...]           # (tf, TB)

    # ---- trunk input layer -------------------------------------------------
    # trunk_features is tiny (2): broadcast FMAs on the VPU beat a K=2 MXU dot.
    if xt.shape[0] <= 8:
        acc = bt0_ref[...]                                   # (C, 1) broadcasts over lanes
        for k in range(xt.shape[0]):                         # static unroll
            acc = acc + wt0_ref[:, k:k + 1] * xt[k:k + 1, :]
        t = jnp.tanh(acc)                                    # (C, TB)
    else:
        t = jnp.tanh(
            jnp.dot(wt0_ref[...], xt, preferred_element_type=f32) + bt0_ref[...]
        )

    # ---- three square hidden Linear + Tanh layers (batch in lanes) ---------
    for k in range(whid_ref.shape[0]):                       # static unroll (3)
        t = jnp.tanh(
            jnp.dot(whid_ref[k], t, preferred_element_type=f32) + bhid_ref[k]
        )

    # ---- P-collapsed head ---------------------------------------------------
    # out = sum_C (G^T @ xb) * t4  +  g^T @ xb           (exact rewrite of the
    # original 1000-wide branch*trunk*llw reduction)
    bg = jnp.dot(gmat_ref[...], xb, preferred_element_type=f32)   # (C, TB)
    head = jnp.sum(bg * t, axis=0, keepdims=True)                 # (1, TB)
    head = head + jnp.dot(gvec_ref[...], xb, preferred_element_type=f32)
    out_ref[...] = head


def linear_branch_deeponet(branch_input, trunk_input, params, *, tb=2048):
    """Pallas forward. `tb` is the batch tile size (lane dim, rounded to 128)."""
    (wb, wt0, bt0, wt1, bt1, wt2, bt2, wt3, bt3, wt4, bt4, llw) = params

    B, branch_features = branch_input.shape
    trunk_features = trunk_input.shape[1]
    C = wt0.shape[1]
    f32 = jnp.float32

    # ---- collapse the P=1000 dimension out of the kernel ---------------------
    wb_l = (wb * llw).astype(f32)                 # (bf, P): llw folded into branch weight
    gmat = (wt4 @ wb_l.T).astype(f32)             # (C, bf)  == ((wb*llw) @ wt4^T)^T
    gvec = (bt4 @ wb_l.T).astype(f32)             # (1, bf)  == ((wb*llw) @ bt4^T)^T

    # ---- trunk weights in (out, in) layout for batch-in-lanes math -----------
    wt0_t = wt0.T.astype(f32)                                 # (C, tf)
    bt0_t = bt0.T.astype(f32)                                 # (C, 1)
    whid_t = jnp.stack([wt1.T, wt2.T, wt3.T], axis=0).astype(f32)   # (3, C, C)
    bhid_t = jnp.stack([bt1.T, bt2.T, bt3.T], axis=0).astype(f32)   # (3, C, 1)

    # ---- batch tiling (batch lives in the lane dimension) --------------------
    tb_req = max(LANE, _round_up(min(int(tb), 8192), LANE))
    b_min = _round_up(B, LANE)
    tb_eff = min(tb_req, b_min)
    if tb_eff >= b_min and b_min >= 2 * LANE:
        # v7x: keep >= 2 grid tiles so the "parallel" axis can use both TensorCores.
        tb_eff = _round_up(b_min // 2, LANE)
    b_pad = _round_up(B, tb_eff)
    num_tiles = b_pad // tb_eff
    db = b_pad - B

    branch_t = jnp.pad(branch_input.T.astype(f32), ((0, 0), (0, db)))   # (bf, b_pad)
    trunk_t = jnp.pad(trunk_input.T.astype(f32), ((0, 0), (0, db)))     # (tf, b_pad)

    inputs = (branch_t, trunk_t, wt0_t, bt0_t, whid_t, bhid_t, gmat, gvec)

    def resident_spec(arr):
        nd = arr.ndim
        return pl.BlockSpec(arr.shape, lambda i, _nd=nd: (0,) * _nd)

    in_specs = [
        pl.BlockSpec((branch_features, tb_eff), lambda i: (0, i)),
        pl.BlockSpec((trunk_features, tb_eff), lambda i: (0, i)),
    ] + [resident_spec(a) for a in inputs[2:]]

    # Lane-dense output: one (1, TB) row per tile into a (1, b_pad) slab.
    out_spec = pl.BlockSpec((1, tb_eff), lambda i: (0, i))

    out = pl.pallas_call(
        deeponet_kernel,
        out_shape=jax.ShapeDtypeStruct((1, b_pad), f32),
        grid_spec=pltpu.PrefetchScalarGridSpec(
            num_scalar_prefetch=0,
            grid=(num_tiles,),
            in_specs=in_specs,
            out_specs=out_spec,
        ),
        compiler_params=pltpu.CompilerParams(
            dimension_semantics=("parallel",),   # batch tiles are independent
            vmem_limit_bytes=16 * 1024 * 1024,   # tiny footprint after P-collapse
        ),
    )(*inputs)

    return out[0, :B].reshape(B, 1)


def init_params(key, branch_features, trunk_features, common_features):
    """Deterministic synthetic init. Weights stored as (in, out), biases as (1, out)."""
    ks = jax.random.split(key, 12)
    scale = 0.1

    def w(k, shape):
        return (scale * jax.random.normal(k, shape)).astype(jnp.float32)

    wb = w(ks[0], (branch_features, P))                      # Linear(branch, 1000, bias=False)
    wt0 = w(ks[1], (trunk_features, common_features))
    bt0 = w(ks[2], (1, common_features))
    wt1 = w(ks[3], (common_features, common_features))
    bt1 = w(ks[4], (1, common_features))
    wt2 = w(ks[5], (common_features, common_features))
    bt2 = w(ks[6], (1, common_features))
    wt3 = w(ks[7], (common_features, common_features))
    bt3 = w(ks[8], (1, common_features))
    wt4 = w(ks[9], (common_features, P))
    bt4 = w(ks[10], (1, P))
    llw = jax.random.normal(ks[11], (1, P)).astype(jnp.float32)  # nn.Parameter(torch.randn(1000))
    return (wb, wt0, bt0, wt1, bt1, wt2, bt2, wt3, bt3, wt4, bt4, llw)


def reference_forward(branch_input, trunk_input, params):
    (wb, wt0, bt0, wt1, bt1, wt2, bt2, wt3, bt3, wt4, bt4, llw) = params
    b = branch_input @ wb
    t = jnp.tanh(trunk_input @ wt0 + bt0)
    t = jnp.tanh(t @ wt1 + bt1)
    t = jnp.tanh(t @ wt2 + bt2)
    t = jnp.tanh(t @ wt3 + bt3)
    t = t @ wt4 + bt4
    return jnp.sum(b * t * llw, axis=1, keepdims=True)


if __name__ == "__main__":
    key = jax.random.PRNGKey(0)
    k_param, k_branch, k_trunk, k_branch2, k_trunk2 = jax.random.split(key, 5)

    branch_features = 32
    trunk_features = 2
    common_features = 32
    params = init_params(k_param, branch_features, trunk_features, common_features)

    # Small batch (single tile, B padded to one 128-lane tile).
    B = 8
    branch_input = jax.random.normal(k_branch, (B, branch_features), dtype=jnp.float32)
    trunk_input = jax.random.normal(k_trunk, (B, trunk_features), dtype=jnp.float32)
    out = jax.block_until_ready(linear_branch_deeponet(branch_input, trunk_input, params))
    ref = reference_forward(branch_input, trunk_input, params)
    assert out.shape == (B, 1)
    assert jnp.allclose(out, ref, atol=1e-3, rtol=1e-3), float(jnp.max(jnp.abs(out - ref)))

    # Multi-tile batch with remainder padding (exercises the tiled grid path).
    B2 = 300
    branch_input2 = jax.random.normal(k_branch2, (B2, branch_features), dtype=jnp.float32)
    trunk_input2 = jax.random.normal(k_trunk2, (B2, trunk_features), dtype=jnp.float32)
    out2 = jax.block_until_ready(
        linear_branch_deeponet(branch_input2, trunk_input2, params, tb=128)
    )
    ref2 = reference_forward(branch_input2, trunk_input2, params)
    assert out2.shape == (B2, 1)
    assert jnp.allclose(out2, ref2, atol=1e-3, rtol=1e-3), float(jnp.max(jnp.abs(out2 - ref2)))

    print("KERNEL_OK")
</pallas_src>

<mosaic_0001>
module attributes {stable_mosaic.version = 11 : i64} {
  func.func @deeponet_kernel(%arg0: i32, %arg1: memref<32x128xf32, #tpu.memory_space<vmem>>, %arg2: memref<2x128xf32, #tpu.memory_space<vmem>>, %arg3: memref<32x2xf32, #tpu.memory_space<vmem>>, %arg4: memref<32x1xf32, #tpu.memory_space<vmem>>, %arg5: memref<3x32x32xf32, #tpu.memory_space<vmem>>, %arg6: memref<3x32x1xf32, #tpu.memory_space<vmem>>, %arg7: memref<32x32xf32, #tpu.memory_space<vmem>>, %arg8: memref<1x32xf32, #tpu.memory_space<vmem>>, %arg9: memref<1x128xf32, #tpu.memory_space<vmem>>) attributes {dimension_semantics = [#tpu.dimension_semantics<parallel>], iteration_bounds = array<i64: 1>, scalar_prefetch = 0 : i64, scratch_operands = 0 : i64, tpu.core_type = #tpu.core_type<tc>, window_params = [{transform_indices = @transform_0, window_bounds = array<i64: 32, 128>}, {transform_indices = @transform_1, window_bounds = array<i64: 2, 128>}, {pipeline_mode = #tpu.pipeline_mode<synchronous>, transform_indices = @transform_2, window_bounds = array<i64: 32, 2>}, {pipeline_mode = #tpu.pipeline_mode<synchronous>, transform_indices = @transform_3, window_bounds = array<i64: 32, 1>}, {pipeline_mode = #tpu.pipeline_mode<synchronous>, transform_indices = @transform_4, window_bounds = array<i64: 3, 32, 32>}, {pipeline_mode = #tpu.pipeline_mode<synchronous>, transform_indices = @transform_5, window_bounds = array<i64: 3, 32, 1>}, {pipeline_mode = #tpu.pipeline_mode<synchronous>, transform_indices = @transform_6, window_bounds = array<i64: 32, 32>}, {pipeline_mode = #tpu.pipeline_mode<synchronous>, transform_indices = @transform_7, window_bounds = array<i64: 1, 32>}, {transform_indices = @transform_8, window_bounds = array<i64: 1, 128>}]} {
    %c0 = arith.constant 0 : index
    %c0_0 = arith.constant 0 : index
    %0 = vector.load %arg1[%c0, %c0_0] : memref<32x128xf32, #tpu.memory_space<vmem>>, vector<32x128xf32>
    %c0_1 = arith.constant 0 : index
    %c0_2 = arith.constant 0 : index
    %1 = vector.load %arg2[%c0_1, %c0_2] : memref<2x128xf32, #tpu.memory_space<vmem>>, vector<2x128xf32>
    %c0_3 = arith.constant 0 : index
    %c0_4 = arith.constant 0 : index
    %2 = vector.load %arg4[%c0_3, %c0_4] : memref<32x1xf32, #tpu.memory_space<vmem>>, vector<32x1xf32>
    %c0_5 = arith.constant 0 : index
    %c0_6 = arith.constant 0 : index
    %3 = vector.load %arg3[%c0_5, %c0_6] : memref<32x2xf32, #tpu.memory_space<vmem>>, vector<32x1xf32>
    %4 = vector.extract_strided_slice %1 {offsets = [0, 0], sizes = [1, 128], strides = [1, 1]} : vector<2x128xf32> to vector<1x128xf32>
    %5 = vector.broadcast %3 : vector<32x1xf32> to vector<32x128xf32>
    %6 = vector.broadcast %4 : vector<1x128xf32> to vector<32x128xf32>
    %7 = arith.mulf %5, %6 : vector<32x128xf32>
    %8 = vector.broadcast %2 : vector<32x1xf32> to vector<32x128xf32>
    %9 = arith.addf %8, %7 : vector<32x128xf32>
    %c0_7 = arith.constant 0 : index
    %c1 = arith.constant 1 : index
    %10 = vector.load %arg3[%c0_7, %c1] : memref<32x2xf32, #tpu.memory_space<vmem>>, vector<32x1xf32>
    %11 = vector.extract_strided_slice %1 {offsets = [1, 0], sizes = [1, 128], strides = [1, 1]} : vector<2x128xf32> to vector<1x128xf32>
    %12 = vector.broadcast %10 : vector<32x1xf32> to vector<32x128xf32>
    %13 = vector.broadcast %11 : vector<1x128xf32> to vector<32x128xf32>
    %14 = arith.mulf %12, %13 : vector<32x128xf32>
    %15 = arith.addf %9, %14 : vector<32x128xf32>
    %16 = math.tanh %15 : vector<32x128xf32>
    %c0_8 = arith.constant 0 : index
    %c0_9 = arith.constant 0 : index
    %c0_10 = arith.constant 0 : index
    %17 = vector.load %arg5[%c0_8, %c0_9, %c0_10] : memref<3x32x32xf32, #tpu.memory_space<vmem>>, vector<1x32x32xf32>
    %18 = vector.shape_cast %17 : vector<1x32x32xf32> to vector<32x32xf32>
    %cst = arith.constant dense<0.000000e+00> : vector<32x128xf32>
    %19 = tpu.matmul %18, %16, %cst {dimension_numbers = #tpu.dot_dimension_numbers<[1], [0], [0], [1], [0, 0, 1, 1], [], []>} : vector<32x32xf32>, vector<32x128xf32>, vector<32x128xf32> -> vector<32x128xf32>
    %c0_11 = arith.constant 0 : index
    %c0_12 = arith.constant 0 : index
    %c0_13 = arith.constant 0 : index
    %20 = vector.load %arg6[%c0_11, %c0_12, %c0_13] : memref<3x32x1xf32, #tpu.memory_space<vmem>>, vector<1x32x1xf32>
    %21 = vector.shape_cast %20 : vector<1x32x1xf32> to vector<32x1xf32>
    %22 = vector.broadcast %21 : vector<32x1xf32> to vector<32x128xf32>
    %23 = arith.addf %19, %22 : vector<32x128xf32>
    %24 = math.tanh %23 : vector<32x128xf32>
    %c1_14 = arith.constant 1 : index
    %c0_15 = arith.constant 0 : index
    %c0_16 = arith.constant 0 : index
    %25 = vector.load %arg5[%c1_14, %c0_15, %c0_16] : memref<3x32x32xf32, #tpu.memory_space<vmem>>, vector<1x32x32xf32>
    %26 = vector.shape_cast %25 : vector<1x32x32xf32> to vector<32x32xf32>
    %cst_17 = arith.constant dense<0.000000e+00> : vector<32x128xf32>
    %27 = tpu.matmul %26, %24, %cst_17 {dimension_numbers = #tpu.dot_dimension_numbers<[1], [0], [0], [1], [0, 0, 1, 1], [], []>} : vector<32x32xf32>, vector<32x128xf32>, vector<32x128xf32> -> vector<32x128xf32>
    %c1_18 = arith.constant 1 : index
    %c0_19 = arith.constant 0 : index
    %c0_20 = arith.constant 0 : index
    %28 = vector.load %arg6[%c1_18, %c0_19, %c0_20] : memref<3x32x1xf32, #tpu.memory_space<vmem>>, vector<1x32x1xf32>
    %29 = vector.shape_cast %28 : vector<1x32x1xf32> to vector<32x1xf32>
    %30 = vector.broadcast %29 : vector<32x1xf32> to vector<32x128xf32>
    %31 = arith.addf %27, %30 : vector<32x128xf32>
    %32 = math.tanh %31 : vector<32x128xf32>
    %c2 = arith.constant 2 : index
    %c0_21 = arith.constant 0 : index
    %c0_22 = arith.constant 0 : index
    %33 = vector.load %arg5[%c2, %c0_21, %c0_22] : memref<3x32x32xf32, #tpu.memory_space<vmem>>, vector<1x32x32xf32>
    %34 = vector.shape_cast %33 : vector<1x32x32xf32> to vector<32x32xf32>
    %cst_23 = arith.constant dense<0.000000e+00> : vector<32x128xf32>
    %35 = tpu.matmul %34, %32, %cst_23 {dimension_numbers = #tpu.dot_dimension_numbers<[1], [0], [0], [1], [0, 0, 1, 1], [], []>} : vector<32x32xf32>, vector<32x128xf32>, vector<32x128xf32> -> vector<32x128xf32>
    %c2_24 = arith.constant 2 : index
    %c0_25 = arith.constant 0 : index
    %c0_26 = arith.constant 0 : index
    %36 = vector.load %arg6[%c2_24, %c0_25, %c0_26] : memref<3x32x1xf32, #tpu.memory_space<vmem>>, vector<1x32x1xf32>
    %37 = vector.shape_cast %36 : vector<1x32x1xf32> to vector<32x1xf32>
    %38 = vector.broadcast %37 : vector<32x1xf32> to vector<32x128xf32>
    %39 = arith.addf %35, %38 : vector<32x128xf32>
    %40 = math.tanh %39 : vector<32x128xf32>
    %c0_27 = arith.constant 0 : index
    %c0_28 = arith.constant 0 : index
    %41 = vector.load %arg7[%c0_27, %c0_28] : memref<32x32xf32, #tpu.memory_space<vmem>>, vector<32x32xf32>
    %cst_29 = arith.constant dense<0.000000e+00> : vector<32x128xf32>
    %42 = tpu.matmul %41, %0, %cst_29 {dimension_numbers = #tpu.dot_dimension_numbers<[1], [0], [0], [1], [0, 0, 1, 1], [], []>} : vector<32x32xf32>, vector<32x128xf32>, vector<32x128xf32> -> vector<32x128xf32>
    %43 = arith.mulf %42, %40 : vector<32x128xf32>
    %cst_30 = arith.constant dense<0.000000e+00> : vector<128xf32>
    %44 = vector.multi_reduction <add>, %43, %cst_30 [0] : vector<32x128xf32> to vector<128xf32>
    %45 = vector.shape_cast %44 : vector<128xf32> to vector<1x128xf32>
    %c0_31 = arith.constant 0 : index
    %c0_32 = arith.constant 0 : index
    %46 = vector.load %arg8[%c0_31, %c0_32] : memref<1x32xf32, #tpu.memory_space<vmem>>, vector<1x32xf32>
    %cst_33 = arith.constant dense<0.000000e+00> : vector<1x128xf32>
    %47 = tpu.matmul %46, %0, %cst_33 {dimension_numbers = #tpu.dot_dimension_numbers<[1], [0], [0], [1], [0, 0, 1, 1], [], []>} : vector<1x32xf32>, vector<32x128xf32>, vector<1x128xf32> -> vector<1x128xf32>
    %48 = arith.addf %45, %47 : vector<1x128xf32>
    %c0_34 = arith.constant 0 : index
    %c0_35 = arith.constant 0 : index
    %49 = vector.load %arg9[%c0_34, %c0_35] : memref<1x128xf32, #tpu.memory_space<vmem>>, vector<1x128xf32>
    tpu.vector_store %arg9[%c0_34, %c0_35], %48 {strides = array<i32>} : memref<1x128xf32, #tpu.memory_space<vmem>>, vector<1x128xf32>,
    return
  }
  func.func @transform_0(%arg0: i32) -> (i32, i32) {
    %c0_i32 = arith.constant 0 : i32
    %c0_i32_0 = arith.constant 0 : i32
    return %c0_i32, %arg0 : i32, i32
  }
  func.func @transform_1(%arg0: i32) -> (i32, i32) {
    %c0_i32 = arith.constant 0 : i32
    %c0_i32_0 = arith.constant 0 : i32
    return %c0_i32, %arg0 : i32, i32
  }
  func.func @transform_2(%arg0: i32) -> (i32, i32) {
    %c0_i32 = arith.constant 0 : i32
    %c0_i32_0 = arith.constant 0 : i32
    %c0_i32_1 = arith.constant 0 : i32
    return %c0_i32, %c0_i32_0 : i32, i32
  }
  func.func @transform_3(%arg0: i32) -> (i32, i32) {
    %c0_i32 = arith.constant 0 : i32
    %c0_i32_0 = arith.constant 0 : i32
    %c0_i32_1 = arith.constant 0 : i32
    return %c0_i32, %c0_i32_0 : i32, i32
  }
  func.func @transform_4(%arg0: i32) -> (i32, i32, i32) {
    %c0_i32 = arith.constant 0 : i32
    %c0_i32_0 = arith.constant 0 : i32
    %c0_i32_1 = arith.constant 0 : i32
    %c0_i32_2 = arith.constant 0 : i32
    return %c0_i32, %c0_i32_0, %c0_i32_1 : i32, i32, i32
  }
  func.func @transform_5(%arg0: i32) -> (i32, i32, i32) {
    %c0_i32 = arith.constant 0 : i32
    %c0_i32_0 = arith.constant 0 : i32
    %c0_i32_1 = arith.constant 0 : i32
    %c0_i32_2 = arith.constant 0 : i32
    return %c0_i32, %c0_i32_0, %c0_i32_1 : i32, i32, i32
  }
  func.func @transform_6(%arg0: i32) -> (i32, i32) {
    %c0_i32 = arith.constant 0 : i32
    %c0_i32_0 = arith.constant 0 : i32
    %c0_i32_1 = arith.constant 0 : i32
    return %c0_i32, %c0_i32_0 : i32, i32
  }
  func.func @transform_7(%arg0: i32) -> (i32, i32) {
    %c0_i32 = arith.constant 0 : i32
    %c0_i32_0 = arith.constant 0 : i32
    %c0_i32_1 = arith.constant 0 : i32
    return %c0_i32, %c0_i32_0 : i32, i32
  }
  func.func @transform_8(%arg0: i32) -> (i32, i32) {
    %c0_i32 = arith.constant 0 : i32
    %c0_i32_0 = arith.constant 0 : i32
    return %c0_i32, %arg0 : i32, i32
  }
}

</mosaic_0001>

<llo_original>
// kernel: tpu_custom_call.1
$region0: #{tpu_custom_call.1}
  #allocation0 [shape = 'u32[]', space=smem, size = 0x4, offset = 0x4, fixed_abs, tag = 'smem constant byte address 0x4 - core index']
  #allocation1 [shape = 'u32[144,128]{1,0:T(1,128)}', space=vmem, size = 0x12000, scoped, tag = 'internal scratch']
  %s0 = inlined_call_operand.vmem [shape: f32[32,128], index: 0, kind: input, shape index: {}]
  %s1 = inlined_call_operand.vmem [shape: f32[2,128], index: 1, kind: input, shape index: {}]
  %s2 = inlined_call_operand.vmem [shape: f32[32,2], index: 2, kind: input, shape index: {}]
  %s3 = inlined_call_operand.vmem [shape: f32[32,1], index: 3, kind: input, shape index: {}]
  %s4 = inlined_call_operand.vmem [shape: f32[3,32,32], index: 4, kind: input, shape index: {}]
  %s5 = inlined_call_operand.vmem [shape: f32[3,32,1], index: 5, kind: input, shape index: {}]
  %s6 = inlined_call_operand.vmem [shape: f32[32,32], index: 6, kind: input, shape index: {}]
  %s7 = inlined_call_operand.vmem [shape: f32[1,32], index: 7, kind: input, shape index: {}]
  %s8 = inlined_call_operand.hbm [shape: f32[1,128], index: 8, kind: output, shape index: {}]
  %s9 = sld [smem:[#allocation0]]
  $region42: #{tpu_custom_call.1} parent=0
    _
  %s11 = ssub.s32 1, %s9
  %s12 = scalar_select 0, %s11, %s9
  $region1: #{tpu_custom_call.1} parent=0
    #allocation2 [shape = 'u8[512]{0}', space=vmem, size = 0x400, scoped, tag = 'output window, operand 0, single buffered']
    #allocation3 [shape = 's32[1]{0}', space=sflag, size = 0x4, scoped, tag = 'scoped memory for tpu_custom_call.1']
    %13 = vsyncpa [#allocation3], 0
    // Predicated region
    $region2: #{tpu_custom_call.1} parent=1 // pred_check
      _
    $region3: #{tpu_custom_call.1} parent=1 // pred_check_branch
      %15 = sbr.rel (0) target = $region5
    $region4: #{tpu_custom_call.1} parent=1 // pred_region
      _
    $region5: #{tpu_custom_call.1} parent=1 // pred_fallthru
      _
    // Predicated region
    $region6: #{tpu_custom_call.1} parent=1 // pred_check
      _
    $region7: #{tpu_custom_call.1} parent=1 // pred_check_branch
      %17 = sbr.rel (0) target = $region9
    $region8: #{tpu_custom_call.1} parent=1 // pred_region
      _
    $region9: #{tpu_custom_call.1} parent=1 // pred_fallthru
      _
    // Predicated region
    $region10: #{tpu_custom_call.1} parent=1 // pred_check
      _
    $region11: #{tpu_custom_call.1} parent=1 // pred_check_branch
      %19 = sbr.rel (0) target = $region13
    $region12: #{tpu_custom_call.1} parent=1 // pred_region
      _
    $region13: #{tpu_custom_call.1} parent=1 // pred_fallthru
      _
    // Predicated region
    $region14: #{tpu_custom_call.1} parent=1 // pred_check
      _
    $region15: #{tpu_custom_call.1} parent=1 // pred_check_branch
      %21 = sbr.rel (0) target = $region17
    $region16: #{tpu_custom_call.1} parent=1 // pred_region
      _
    $region17: #{tpu_custom_call.1} parent=1 // pred_fallthru
      _
    // Predicated region
    $region18: #{tpu_custom_call.1} parent=1 // pred_check
      _
    $region19: #{tpu_custom_call.1} parent=1 // pred_check_branch
      %23 = sbr.rel (0) target = $region21
    $region20: #{tpu_custom_call.1} parent=1 // pred_region
      _
    $region21: #{tpu_custom_call.1} parent=1 // pred_fallthru
      _
    // Predicated region
    $region22: #{tpu_custom_call.1} parent=1 // pred_check
      _
    $region23: #{tpu_custom_call.1} parent=1 // pred_check_branch
      %25 = sbr.rel (0) target = $region25
    $region24: #{tpu_custom_call.1} parent=1 // pred_region
      _
    $region25: #{tpu_custom_call.1} parent=1 // pred_fallthru
      _
    // Predicated region
    $region26: #{tpu_custom_call.1} parent=1 // pred_check
      _
    $region27: #{tpu_custom_call.1} parent=1 // pred_check_branch
      %27 = sbr.rel (0) target = $region29
    $region28: #{tpu_custom_call.1} parent=1 // pred_region
      _
    $region29: #{tpu_custom_call.1} parent=1 // pred_fallthru
      _
    // Predicated region
    $region30: #{tpu_custom_call.1} parent=1 // pred_check
      _
    $region31: #{tpu_custom_call.1} parent=1 // pred_check_branch
      %29 = sbr.rel (0) target = $region33
    $region32: #{tpu_custom_call.1} parent=1 // pred_region
      _
    $region33: #{tpu_custom_call.1} parent=1 // pred_fallthru
      _
    %v30 = vld [vmem:[%s0] sm:$0xff]
    %v31 = vld [vmem:[%s0 + $0x8] sm:$0xff]
    %v32 = vld [vmem:[%s0 + $0x10] sm:$0xff]
    %v33 = vld [vmem:[%s0 + $0x18] sm:$0xff]
    %v34 = vld [vmem:[%s1] sm:$0x3]
    %v35 = vld [vmem:[%s3] sm:$0xff]
    %v36 = vld [vmem:[%s3 + $0x8] sm:$0xff]
    %v37 = vld [vmem:[%s3 + $0x10] sm:$0xff]
    %v38 = vld [vmem:[%s3 + $0x18] sm:$0xff]
    %v39 = vld [vmem:[%s2] sm:$0xff]
    %v40 = vld [vmem:[%s2 + $0x8] sm:$0xff]
    %v41 = vld [vmem:[%s2 + $0x10] sm:$0xff]
    %v42 = vld [vmem:[%s2 + $0x18] sm:$0xff]
    %44 = vset.pattern.permute.xlu0 0
    %45 = vperm.xlu0 %44, %v39
    %v46 = vpop.permute.xlu0 %45
    %49 = vset.pattern.permute.xlu0 0
    %50 = vperm.xlu0 %49, %v40
    %v51 = vpop.permute.xlu0 %50
    %54 = vset.pattern.permute.xlu0 0
    %55 = vperm.xlu0 %54, %v41
    %v56 = vpop.permute.xlu0 %55
    %59 = vset.pattern.permute.xlu0 0
    %60 = vperm.xlu0 %59, %v42
    %v61 = vpop.permute.xlu0 %60
    %v63 = vlaneseq
    %v64 = vshrl.u32 %v63, 7
    %v65 = vsub.s32 0, %v64
    %v66 = vrot.slane %v34, %v65
    %v67 = vmul.f32 %v46, %v66
    %v68 = vmul.f32 %v51, %v66
    %v69 = vmul.f32 %v56, %v66
    %v70 = vmul.f32 %v61, %v66
    %72 = vset.pattern.permute.xlu0 0
    %73 = vperm.xlu0 %72, %v35
    %v74 = vpop.permute.xlu0 %73
    %77 = vset.pattern.permute.xlu0 0
    %78 = vperm.xlu0 %77, %v36
    %v79 = vpop.permute.xlu0 %78
    %82 = vset.pattern.permute.xlu0 0
    %83 = vperm.xlu0 %82, %v37
    %v84 = vpop.permute.xlu0 %83
    %87 = vset.pattern.permute.xlu0 0
    %88 = vperm.xlu0 %87, %v38
    %v89 = vpop.permute.xlu0 %88
    %v91 = vadd.f32 %v74, %v67
    %v92 = vadd.f32 %v79, %v68
    %v93 = vadd.f32 %v84, %v69
    %v94 = vadd.f32 %v89, %v70
    %95 = vset.pattern.permute.xlu0 1
    %96 = vperm.xlu0 %95, %v39
    %v97 = vpop.permute.xlu0 %96
    %99 = vset.pattern.permute.xlu0 1
    %100 = vperm.xlu0 %99, %v40
    %v101 = vpop.permute.xlu0 %100
    %103 = vset.pattern.permute.xlu0 1
    %104 = vperm.xlu0 %103, %v41
    %v105 = vpop.permute.xlu0 %104
    %107 = vset.pattern.permute.xlu0 1
    %108 = vperm.xlu0 %107, %v42
    %v109 = vpop.permute.xlu0 %108
    %v111 = vlaneseq
    %v112 = vshrl.u32 %v111, 7
    %v113 = vsub.s32 1, %v112
    %v114 = vrot.slane %v34, %v113
    %v115 = vmul.f32 %v97, %v114
    %v116 = vmul.f32 %v101, %v114
    %v117 = vmul.f32 %v105, %v114
    %v118 = vmul.f32 %v109, %v114
    %v119 = vadd.f32 %v91, %v115
    %v120 = vadd.f32 %v92, %v116
    %v121 = vadd.f32 %v93, %v117
    %v122 = vadd.f32 %v94, %v118
    %v123 = vtanh.pop %v119
    %v124 = vtanh.pop %v120
    %v125 = vtanh.pop %v121
    %v126 = vtanh.pop %v122
    %v127 = vld [vmem:[%s4] sm:$0xff]
    %v128 = vld [vmem:[%s4 + $0x8] sm:$0xff]
    %v129 = vld [vmem:[%s4 + $0x10] sm:$0xff]
    %v130 = vld [vmem:[%s4 + $0x18] sm:$0xff]
    %v131 = vld [vmem:[%s5] sm:$0xff]
    %v132 = vld [vmem:[%s5 + $0x8] sm:$0xff]
    %v133 = vld [vmem:[%s5 + $0x10] sm:$0xff]
    %v134 = vld [vmem:[%s5 + $0x18] sm:$0xff]
    %136 = vset.pattern.permute.xlu0 0
    %137 = vperm.xlu0 %136, %v131
    %v138 = vpop.permute.xlu0 %137
    %141 = vset.pattern.permute.xlu0 0
    %142 = vperm.xlu0 %141, %v132
    %v143 = vpop.permute.xlu0 %142
    %146 = vset.pattern.permute.xlu0 0
    %147 = vperm.xlu0 %146, %v133
    %v148 = vpop.permute.xlu0 %147
    %151 = vset.pattern.permute.xlu0 0
    %152 = vperm.xlu0 %151, %v134
    %v153 = vpop.permute.xlu0 %152
    %vm155 = vcmask 261120
    %v157 = vsel %vm155, %v127, 0
    %v160 = vsel %vm155, %v128, 0
    %v163 = vsel %vm155, %v129, 0
    %v166 = vsel %vm155, %v130, 0
    %168 = vmatprep.subr.mxu0 0.0
    %169 = vmatpush1.msra.mxu0 %v123
    %170 = vmatprep.subr.mxu0 0.0
    %171 = vmatpush1.msra.mxu0 %v124
    %172 = vmatprep.subr.mxu0 0.0
    %173 = vmatpush1.msra.mxu0 %v125
    %174 = vmatprep.subr.mxu0 0.0
    %175 = vmatpush1.msra.mxu0 %v126
    %176 = vmatprep.subr.mxu0 0.0
    %177 = vmatpush1.msra.mxu0 0.0
    %178 = vmatprep.subr.mxu0 0.0
    %179 = vmatpush1.msra.mxu0 0.0
    %180 = vmatprep.subr.mxu0 0.0
    %181 = vmatpush1.msra.mxu0 0.0
    %182 = vmatprep.subr.mxu0 0.0
    %183 = vmatpush1.msra.mxu0 0.0
    %184 = vmatprep.subr.mxu0 0.0
    %185 = vmatpush1.msra.mxu0 0.0
    %186 = vmatprep.subr.mxu0 0.0
    %187 = vmatpush1.msra.mxu0 0.0
    %188 = vmatprep.subr.mxu0 0.0
    %189 = vmatpush1.msra.mxu0 0.0
    %190 = vmatprep.subr.mxu0 0.0
    %191 = vmatpush1.msra.mxu0 0.0
    %192 = vmatprep.subr.mxu0 0.0
    %193 = vmatpush1.msra.mxu0 0.0
    %194 = vmatprep.subr.mxu0 0.0
    %195 = vmatpush1.msra.mxu0 0.0
    %196 = vmatprep.subr.mxu0 0.0
    %197 = vmatpush1.msra.mxu0 0.0
    %198 = vmatprep.subr.mxu0 0.0
    %199 = vmatpush1.msra.mxu0 0.0
    %200 = vmatprep.subr.mxu0 0.0
    %201 = vmatpush1.msra.mxu0 0.0
    %202 = vmatprep.subr.mxu0 0.0
    %203 = vmatpush1.msra.mxu0 0.0
    %204 = vmatprep.subr.mxu0 0.0
    %205 = vmatpush1.msra.mxu0 0.0
    %206 = vmatprep.subr.mxu0 0.0
    %207 = vmatpush1.msra.mxu0 0.0
    %208 = vmatprep.subr.mxu0 0.0
    %209 = vmatpush1.msra.mxu0 0.0
    %210 = vmatprep.subr.mxu0 0.0
    %211 = vmatpush1.msra.mxu0 0.0
    %212 = vmatprep.subr.mxu0 0.0
    %213 = vmatpush1.msra.mxu0 0.0
    %214 = vmatprep.subr.mxu0 0.0
    %215 = vmatpush1.msra.mxu0 0.0
    %216 = vmatprep.subr.mxu0 0.0
    %217 = vmatpush1.msra.mxu0 0.0
    %218 = vmatprep.subr.mxu0 0.0
    %219 = vmatpush1.msra.mxu0 0.0
    %220 = vmatprep.subr.mxu0 0.0
    %221 = vmatpush1.msra.mxu0 0.0
    %222 = vmatprep.subr.mxu0 0.0
    %223 = vmatpush1.msra.mxu0 0.0
    %224 = vmatprep.subr.mxu0 0.0
    %225 = vmatpush1.msra.mxu0 0.0
    %226 = vmatprep.subr.mxu0 0.0
    %227 = vmatpush1.msra.mxu0 0.0
    %228 = vmatprep.subr.mxu0 0.0
    %229 = vmatpush1.msra.mxu0 0.0
    %230 = vmatprep.subr.mxu0 0.0
    %231 = vmatpush1.msra.mxu0 0.0
    %232 = vmatprep.mubr.f32.mxu0 0.0
    %233 = vmatmul.mubr.f32.gmra.mrb[0].mxu0 %v157
    %v234 = vpop.f32.mrb[0].mxu0
    %v235 = vadd.f32 %v138, %v234
    %v236 = vpop.f32.mrb[0].mxu0
    %237 = vmatprep.mubr.f32.mxu0 0.0
    %238 = vmatmul.mubr.f32.gmra.mrb[0].mxu0 %v160
    %v239 = vpop.f32.mrb[0].mxu0
    %v240 = vadd.f32 %v143, %v239
    %v241 = vpop.f32.mrb[0].mxu0
    %242 = vmatprep.mubr.f32.mxu0 0.0
    %243 = vmatmul.mubr.f32.gmra.mrb[0].mxu0 %v163
    %v244 = vpop.f32.mrb[0].mxu0
    %v245 = vadd.f32 %v148, %v244
    %v246 = vpop.f32.mrb[0].mxu0
    %247 = vmatprep.mubr.f32.mxu0 0.0
    %248 = vmatmul.mubr.f32.gmra.mrb[0].mxu0 %v166
    %v249 = vpop.f32.mrb[0].mxu0
    %v250 = vadd.f32 %v153, %v249
    %v251 = vpop.f32.mrb[0].mxu0
    %252 = vdwg.mxu0
    %v253 = vtanh.pop %v235
    %v254 = vtanh.pop %v240
    %v255 = vtanh.pop %v245
    %v256 = vtanh.pop %v250
    %s257 = scalar_lea.vmem %s4, 32
    %v258 = vld [vmem:[%s257] sm:$0xff]
    %v259 = vld [vmem:[%s257 + $0x8] sm:$0xff]
    %v260 = vld [vmem:[%s257 + $0x10] sm:$0xff]
    %v261 = vld [vmem:[%s257 + $0x18] sm:$0xff]
    %s262 = scalar_lea.vmem %s5, 32
    %v263 = vld [vmem:[%s262] sm:$0xff]
    %v264 = vld [vmem:[%s262 + $0x8] sm:$0xff]
    %v265 = vld [vmem:[%s262 + $0x10] sm:$0xff]
    %v266 = vld [vmem:[%s262 + $0x18] sm:$0xff]
    %268 = vset.pattern.permute.xlu0 0
    %269 = vperm.xlu0 %268, %v263
    %v270 = vpop.permute.xlu0 %269
    %273 = vset.pattern.permute.xlu0 0
    %274 = vperm.xlu0 %273, %v264
    %v275 = vpop.permute.xlu0 %274
    %278 = vset.pattern.permute.xlu0 0
    %279 = vperm.xlu0 %278, %v265
    %v280 = vpop.permute.xlu0 %279
    %283 = vset.pattern.permute.xlu0 0
    %284 = vperm.xlu0 %283, %v266
    %v285 = vpop.permute.xlu0 %284
    %v288 = vsel %vm155, %v258, 0
    %v291 = vsel %vm155, %v259, 0
    %v294 = vsel %vm155, %v260, 0
    %v297 = vsel %vm155, %v261, 0
    %299 = vmatprep.subr.mxu0 0.0
    %300 = vmatpush1.msra.mxu0 %v253
    %301 = vmatprep.subr.mxu0 0.0
    %302 = vmatpush1.msra.mxu0 %v254
    %303 = vmatprep.subr.mxu0 0.0
    %304 = vmatpush1.msra.mxu0 %v255
    %305 = vmatprep.subr.mxu0 0.0
    %306 = vmatpush1.msra.mxu0 %v256
    %307 = vmatprep.subr.mxu0 0.0
    %308 = vmatpush1.msra.mxu0 0.0
    %309 = vmatprep.subr.mxu0 0.0
    %310 = vmatpush1.msra.mxu0 0.0
    %311 = vmatprep.subr.mxu0 0.0
    %312 = vmatpush1.msra.mxu0 0.0
    %313 = vmatprep.subr.mxu0 0.0
    %314 = vmatpush1.msra.mxu0 0.0
    %315 = vmatprep.subr.mxu0 0.0
    %316 = vmatpush1.msra.mxu0 0.0
    %317 = vmatprep.subr.mxu0 0.0
    %318 = vmatpush1.msra.mxu0 0.0
    %319 = vmatprep.subr.mxu0 0.0
    %320 = vmatpush1.msra.mxu0 0.0
    %321 = vmatprep.subr.mxu0 0.0
    %322 = vmatpush1.msra.mxu0 0.0
    %323 = vmatprep.subr.mxu0 0.0
    %324 = vmatpush1.msra.mxu0 0.0
    %325 = vmatprep.subr.mxu0 0.0
    %326 = vmatpush1.msra.mxu0 0.0
    %327 = vmatprep.subr.mxu0 0.0
    %328 = vmatpush1.msra.mxu0 0.0
    %329 = vmatprep.subr.mxu0 0.0
    %330 = vmatpush1.msra.mxu0 0.0
    %331 = vmatprep.subr.mxu0 0.0
    %332 = vmatpush1.msra.mxu0 0.0
    %333 = vmatprep.subr.mxu0 0.0
    %334 = vmatpush1.msra.mxu0 0.0
    %335 = vmatprep.subr.mxu0 0.0
    %336 = vmatpush1.msra.mxu0 0.0
    %337 = vmatprep.subr.mxu0 0.0
    %338 = vmatpush1.msra.mxu0 0.0
    %339 = vmatprep.subr.mxu0 0.0
    %340 = vmatpush1.msra.mxu0 0.0
    %341 = vmatprep.subr.mxu0 0.0
    %342 = vmatpush1.msra.mxu0 0.0
    %343 = vmatprep.subr.mxu0 0.0
    %344 = vmatpush1.msra.mxu0 0.0
    %345 = vmatprep.subr.mxu0 0.0
    %346 = vmatpush1.msra.mxu0 0.0
    %347 = vmatprep.subr.mxu0 0.0
    %348 = vmatpush1.msra.mxu0 0.0
    %349 = vmatprep.subr.mxu0 0.0
    %350 = vmatpush1.msra.mxu0 0.0
    %351 = vmatprep.subr.mxu0 0.0
    %352 = vmatpush1.msra.mxu0 0.0
    %353 = vmatprep.subr.mxu0 0.0
    %354 = vmatpush1.msra.mxu0 0.0
    %355 = vmatprep.subr.mxu0 0.0
    %356 = vmatpush1.msra.mxu0 0.0
    %357 = vmatprep.subr.mxu0 0.0
    %358 = vmatpush1.msra.mxu0 0.0
    %359 = vmatprep.subr.mxu0 0.0
    %360 = vmatpush1.msra.mxu0 0.0
    %361 = vmatprep.subr.mxu0 0.0
    %362 = vmatpush1.msra.mxu0 0.0
    %363 = vmatprep.mubr.f32.mxu0 0.0
    %364 = vmatmul.mubr.f32.gmra.mrb[0].mxu0 %v288
    %v365 = vpop.f32.mrb[0].mxu0
    %v366 = vadd.f32 %v270, %v365
    %v367 = vpop.f32.mrb[0].mxu0
    %368 = vmatprep.mubr.f32.mxu0 0.0
    %369 = vmatmul.mubr.f32.gmra.mrb[0].mxu0 %v291
    %v370 = vpop.f32.mrb[0].mxu0
    %v371 = vadd.f32 %v275, %v370
    %v372 = vpop.f32.mrb[0].mxu0
    %373 = vmatprep.mubr.f32.mxu0 0.0
    %374 = vmatmul.mubr.f32.gmra.mrb[0].mxu0 %v294
    %v375 = vpop.f32.mrb[0].mxu0
    %v376 = vadd.f32 %v280, %v375
    %v377 = vpop.f32.mrb[0].mxu0
    %378 = vmatprep.mubr.f32.mxu0 0.0
    %379 = vmatmul.mubr.f32.gmra.mrb[0].mxu0 %v297
    %v380 = vpop.f32.mrb[0].mxu0
    %v381 = vadd.f32 %v285, %v380
    %v382 = vpop.f32.mrb[0].mxu0
    %383 = vdwg.mxu0
    %v384 = vtanh.pop %v366
    %v385 = vtanh.pop %v371
    %v386 = vtanh.pop %v376
    %v387 = vtanh.pop %v381
    %s388 = scalar_lea.vmem %s4, 64
    %v389 = vld [vmem:[%s388] sm:$0xff]
    %v390 = vld [vmem:[%s388 + $0x8] sm:$0xff]
    %v391 = vld [vmem:[%s388 + $0x10] sm:$0xff]
    %v392 = vld [vmem:[%s388 + $0x18] sm:$0xff]
    %s393 = scalar_lea.vmem %s5, 64
    %v394 = vld [vmem:[%s393] sm:$0xff]
    %v395 = vld [vmem:[%s393 + $0x8] sm:$0xff]
    %v396 = vld [vmem:[%s393 + $0x10] sm:$0xff]
    %v397 = vld [vmem:[%s393 + $0x18] sm:$0xff]
    %399 = vset.pattern.permute.xlu0 0
    %400 = vperm.xlu0 %399, %v394
    %v401 = vpop.permute.xlu0 %400
    %404 = vset.pattern.permute.xlu0 0
    %405 = vperm.xlu0 %404, %v395
    %v406 = vpop.permute.xlu0 %405
    %409 = vset.pattern.permute.xlu0 0
    %410 = vperm.xlu0 %409, %v396
    %v411 = vpop.permute.xlu0 %410
    %414 = vset.pattern.permute.xlu0 0
    %415 = vperm.xlu0 %414, %v397
    %v416 = vpop.permute.xlu0 %415
    %v419 = vsel %vm155, %v389, 0
    %v422 = vsel %vm155, %v390, 0
    %v425 = vsel %vm155, %v391, 0
    %v428 = vsel %vm155, %v392, 0
    %430 = vmatprep.subr.mxu0 0.0
    %431 = vmatpush1.msra.mxu0 %v384
    %432 = vmatprep.subr.mxu0 0.0
    %433 = vmatpush1.msra.mxu0 %v385
    %434 = vmatprep.subr.mxu0 0.0
    %435 = vmatpush1.msra.mxu0 %v386
    %436 = vmatprep.subr.mxu0 0.0
    %437 = vmatpush1.msra.mxu0 %v387
    %438 = vmatprep.subr.mxu0 0.0
    %439 = vmatpush1.msra.mxu0 0.0
    %440 = vmatprep.subr.mxu0 0.0
    %441 = vmatpush1.msra.mxu0 0.0
    %442 = vmatprep.subr.mxu0 0.0
    %443 = vmatpush1.msra.mxu0 0.0
    %444 = vmatprep.subr.mxu0 0.0
    %445 = vmatpush1.msra.mxu0 0.0
    %446 = vmatprep.subr.mxu0 0.0
    %447 = vmatpush1.msra.mxu0 0.0
    %448 = vmatprep.subr.mxu0 0.0
    %449 = vmatpush1.msra.mxu0 0.0
    %450 = vmatprep.subr.mxu0 0.0
    %451 = vmatpush1.msra.mxu0 0.0
    %452 = vmatprep.subr.mxu0 0.0
    %453 = vmatpush1.msra.mxu0 0.0
    %454 = vmatprep.subr.mxu0 0.0
    %455 = vmatpush1.msra.mxu0 0.0
    %456 = vmatprep.subr.mxu0 0.0
    %457 = vmatpush1.msra.mxu0 0.0
    %458 = vmatprep.subr.mxu0 0.0
    %459 = vmatpush1.msra.mxu0 0.0
    %460 = vmatprep.subr.mxu0 0.0
    %461 = vmatpush1.msra.mxu0 0.0
    %462 = vmatprep.subr.mxu0 0.0
    %463 = vmatpush1.msra.mxu0 0.0
    %464 = vmatprep.subr.mxu0 0.0
    %465 = vmatpush1.msra.mxu0 0.0
    %466 = vmatprep.subr.mxu0 0.0
    %467 = vmatpush1.msra.mxu0 0.0
    %468 = vmatprep.subr.mxu0 0.0
    %469 = vmatpush1.msra.mxu0 0.0
    %470 = vmatprep.subr.mxu0 0.0
    %471 = vmatpush1.msra.mxu0 0.0
    %472 = vmatprep.subr.mxu0 0.0
    %473 = vmatpush1.msra.mxu0 0.0
    %474 = vmatprep.subr.mxu0 0.0
    %475 = vmatpush1.msra.mxu0 0.0
    %476 = vmatprep.subr.mxu0 0.0
    %477 = vmatpush1.msra.mxu0 0.0
    %478 = vmatprep.subr.mxu0 0.0
    %479 = vmatpush1.msra.mxu0 0.0
    %480 = vmatprep.subr.mxu0 0.0
    %481 = vmatpush1.msra.mxu0 0.0
    %482 = vmatprep.subr.mxu0 0.0
    %483 = vmatpush1.msra.mxu0 0.0
    %484 = vmatprep.subr.mxu0 0.0
    %485 = vmatpush1.msra.mxu0 0.0
    %486 = vmatprep.subr.mxu0 0.0
    %487 = vmatpush1.msra.mxu0 0.0
    %488 = vmatprep.subr.mxu0 0.0
    %489 = vmatpush1.msra.mxu0 0.0
    %490 = vmatprep.subr.mxu0 0.0
    %491 = vmatpush1.msra.mxu0 0.0
    %492 = vmatprep.subr.mxu0 0.0
    %493 = vmatpush1.msra.mxu0 0.0
    %494 = vmatprep.mubr.f32.mxu0 0.0
    %495 = vmatmul.mubr.f32.gmra.mrb[0].mxu0 %v419
    %v496 = vpop.f32.mrb[0].mxu0
    %v497 = vadd.f32 %v401, %v496
    %v498 = vpop.f32.mrb[0].mxu0
    %499 = vmatprep.mubr.f32.mxu0 0.0
    %500 = vmatmul.mubr.f32.gmra.mrb[0].mxu0 %v422
    %v501 = vpop.f32.mrb[0].mxu0
    %v502 = vadd.f32 %v406, %v501
    %v503 = vpop.f32.mrb[0].mxu0
    %504 = vmatprep.mubr.f32.mxu0 0.0
    %505 = vmatmul.mubr.f32.gmra.mrb[0].mxu0 %v425
    %v506 = vpop.f32.mrb[0].mxu0
    %v507 = vadd.f32 %v411, %v506
    %v508 = vpop.f32.mrb[0].mxu0
    %509 = vmatprep.mubr.f32.mxu0 0.0
    %510 = vmatmul.mubr.f32.gmra.mrb[0].mxu0 %v428
    %v511 = vpop.f32.mrb[0].mxu0
    %v512 = vadd.f32 %v416, %v511
    %v513 = vpop.f32.mrb[0].mxu0
    %514 = vdwg.mxu0
    %v515 = vtanh.pop %v497
    %v516 = vtanh.pop %v502
    %v517 = vtanh.pop %v507
    %v518 = vtanh.pop %v512
    %v519 = vld [vmem:[%s6] sm:$0xff]
    %v520 = vld [vmem:[%s6 + $0x8] sm:$0xff]
    %v521 = vld [vmem:[%s6 + $0x10] sm:$0xff]
    %v522 = vld [vmem:[%s6 + $0x18] sm:$0xff]
    %v524 = vsel %vm155, %v519, 0
    %v527 = vsel %vm155, %v520, 0
    %v530 = vsel %vm155, %v521, 0
    %v533 = vsel %vm155, %v522, 0
    %535 = vmatprep.subr.mxu0 0.0
    %536 = vmatpush1.msra.mxu0 %v30
    %537 = vmatprep.subr.mxu0 0.0
    %538 = vmatpush1.msra.mxu0 %v31
    %539 = vmatprep.subr.mxu0 0.0
    %540 = vmatpush1.msra.mxu0 %v32
    %541 = vmatprep.subr.mxu0 0.0
    %542 = vmatpush1.msra.mxu0 %v33
    %543 = vmatprep.subr.mxu0 0.0
    %544 = vmatpush1.msra.mxu0 0.0
    %545 = vmatprep.subr.mxu0 0.0
    %546 = vmatpush1.msra.mxu0 0.0
    %547 = vmatprep.subr.mxu0 0.0
    %548 = vmatpush1.msra.mxu0 0.0
    %549 = vmatprep.subr.mxu0 0.0
    %550 = vmatpush1.msra.mxu0 0.0
    %551 = vmatprep.subr.mxu0 0.0
    %552 = vmatpush1.msra.mxu0 0.0
    %553 = vmatprep.subr.mxu0 0.0
    %554 = vmatpush1.msra.mxu0 0.0
    %555 = vmatprep.subr.mxu0 0.0
    %556 = vmatpush1.msra.mxu0 0.0
    %557 = vmatprep.subr.mxu0 0.0
    %558 = vmatpush1.msra.mxu0 0.0
    %559 = vmatprep.subr.mxu0 0.0
    %560 = vmatpush1.msra.mxu0 0.0
    %561 = vmatprep.subr.mxu0 0.0
    %562 = vmatpush1.msra.mxu0 0.0
    %563 = vmatprep.subr.mxu0 0.0
    %564 = vmatpush1.msra.mxu0 0.0
    %565 = vmatprep.subr.mxu0 0.0
    %566 = vmatpush1.msra.mxu0 0.0
    %567 = vmatprep.subr.mxu0 0.0
    %568 = vmatpush1.msra.mxu0 0.0
    %569 = vmatprep.subr.mxu0 0.0
    %570 = vmatpush1.msra.mxu0 0.0
    %571 = vmatprep.subr.mxu0 0.0
    %572 = vmatpush1.msra.mxu0 0.0
    %573 = vmatprep.subr.mxu0 0.0
    %574 = vmatpush1.msra.mxu0 0.0
    %575 = vmatprep.subr.mxu0 0.0
    %576 = vmatpush1.msra.mxu0 0.0
    %577 = vmatprep.subr.mxu0 0.0
    %578 = vmatpush1.msra.mxu0 0.0
    %579 = vmatprep.subr.mxu0 0.0
    %580 = vmatpush1.msra.mxu0 0.0
    %581 = vmatprep.subr.mxu0 0.0
    %582 = vmatpush1.msra.mxu0 0.0
    %583 = vmatprep.subr.mxu0 0.0
    %584 = vmatpush1.msra.mxu0 0.0
    %585 = vmatprep.subr.mxu0 0.0
    %586 = vmatpush1.msra.mxu0 0.0
    %587 = vmatprep.subr.mxu0 0.0
    %588 = vmatpush1.msra.mxu0 0.0
    %589 = vmatprep.subr.mxu0 0.0
    %590 = vmatpush1.msra.mxu0 0.0
    %591 = vmatprep.subr.mxu0 0.0
    %592 = vmatpush1.msra.mxu0 0.0
    %593 = vmatprep.subr.mxu0 0.0
    %594 = vmatpush1.msra.mxu0 0.0
    %595 = vmatprep.subr.mxu0 0.0
    %596 = vmatpush1.msra.mxu0 0.0
    %597 = vmatprep.subr.mxu0 0.0
    %598 = vmatpush1.msra.mxu0 0.0
    %599 = vmatprep.mubr.f32.mxu0 0.0
    %600 = vmatmul.mubr.f32.gmra.mrb[0].mxu0 %v524
    %v601 = vpop.f32.mrb[0].mxu0
    %v602 = vadd.f32 0.0, %v601
    %v603 = vpop.f32.mrb[0].mxu0
    %604 = vmatprep.mubr.f32.mxu0 0.0
    %605 = vmatmul.mubr.f32.gmra.mrb[0].mxu0 %v527
    %v606 = vpop.f32.mrb[0].mxu0
    %v607 = vadd.f32 0.0, %v606
    %v608 = vpop.f32.mrb[0].mxu0
    %609 = vmatprep.mubr.f32.mxu0 0.0
    %610 = vmatmul.mubr.f32.gmra.mrb[0].mxu0 %v530
    %v611 = vpop.f32.mrb[0].mxu0
    %v612 = vadd.f32 0.0, %v611
    %v613 = vpop.f32.mrb[0].mxu0
    %614 = vmatprep.mubr.f32.mxu0 0.0
    %615 = vmatmul.mubr.f32.gmra.mrb[0].mxu0 %v533
    %v616 = vpop.f32.mrb[0].mxu0
    %v617 = vadd.f32 0.0, %v616
    %v618 = vpop.f32.mrb[0].mxu0
    %619 = vdwg.mxu0
    %v620 = vmul.f32 %v602, %v515
    %v621 = vmul.f32 %v607, %v516
    %v622 = vmul.f32 %v612, %v517
    %v623 = vmul.f32 %v617, %v518
    %v624 = vadd.f32 %v620, %v621
    %v625 = vadd.f32 %v624, %v622
    %v626 = vadd.f32 %v625, %v623
    %v627 = vrot.slane %v626, 4
    %v628 = vadd.f32 %v626, %v627
    %v629 = vrot.slane %v628, 2
    %v630 = vadd.f32 %v628, %v629
    %v631 = vrot.slane %v630, 1
    %v632 = vadd.f32 %v630, %v631
    %v633 = vld [vmem:[%s7] sm:$0x1]
    %v635 = vsel %vm155, %v633, 0
    %637 = vmatprep.subr.mxu0 0.0
    %638 = vmatpush1.msra.mxu0 %v30
    %639 = vmatprep.subr.mxu0 0.0
    %640 = vmatpush1.msra.mxu0 %v31
    %641 = vmatprep.subr.mxu0 0.0
    %642 = vmatpush1.msra.mxu0 %v32
    %643 = vmatprep.subr.mxu0 0.0
    %644 = vmatpush1.msra.mxu0 %v33
    %645 = vmatprep.subr.mxu0 0.0
    %646 = vmatpush1.msra.mxu0 0.0
    %647 = vmatprep.subr.mxu0 0.0
    %648 = vmatpush1.msra.mxu0 0.0
    %649 = vmatprep.subr.mxu0 0.0
    %650 = vmatpush1.msra.mxu0 0.0
    %651 = vmatprep.subr.mxu0 0.0
    %652 = vmatpush1.msra.mxu0 0.0
    %653 = vmatprep.subr.mxu0 0.0
    %654 = vmatpush1.msra.mxu0 0.0
    %655 = vmatprep.subr.mxu0 0.0
    %656 = vmatpush1.msra.mxu0 0.0
    %657 = vmatprep.subr.mxu0 0.0
    %658 = vmatpush1.msra.mxu0 0.0
    %659 = vmatprep.subr.mxu0 0.0
    %660 = vmatpush1.msra.mxu0 0.0
    %661 = vmatprep.subr.mxu0 0.0
    %662 = vmatpush1.msra.mxu0 0.0
    %663 = vmatprep.subr.mxu0 0.0
    %664 = vmatpush1.msra.mxu0 0.0
    %665 = vmatprep.subr.mxu0 0.0
    %666 = vmatpush1.msra.mxu0 0.0
    %667 = vmatprep.subr.mxu0 0.0
    %668 = vmatpush1.msra.mxu0 0.0
    %669 = vmatprep.subr.mxu0 0.0
    %670 = vmatpush1.msra.mxu0 0.0
    %671 = vmatprep.subr.mxu0 0.0
    %672 = vmatpush1.msra.mxu0 0.0
    %673 = vmatprep.subr.mxu0 0.0
    %674 = vmatpush1.msra.mxu0 0.0
    %675 = vmatprep.subr.mxu0 0.0
    %676 = vmatpush1.msra.mxu0 0.0
    %677 = vmatprep.subr.mxu0 0.0
    %678 = vmatpush1.msra.mxu0 0.0
    %679 = vmatprep.subr.mxu0 0.0
    %680 = vmatpush1.msra.mxu0 0.0
    %681 = vmatprep.subr.mxu0 0.0
    %682 = vmatpush1.msra.mxu0 0.0
    %683 = vmatprep.subr.mxu0 0.0
    %684 = vmatpush1.msra.mxu0 0.0
    %685 = vmatprep.subr.mxu0 0.0
    %686 = vmatpush1.msra.mxu0 0.0
    %687 = vmatprep.subr.mxu0 0.0
    %688 = vmatpush1.msra.mxu0 0.0
    %689 = vmatprep.subr.mxu0 0.0
    %690 = vmatpush1.msra.mxu0 0.0
    %691 = vmatprep.subr.mxu0 0.0
    %692 = vmatpush1.msra.mxu0 0.0
    %693 = vmatprep.subr.mxu0 0.0
    %694 = vmatpush1.msra.mxu0 0.0
    %695 = vmatprep.subr.mxu0 0.0
    %696 = vmatpush1.msra.mxu0 0.0
    %697 = vmatprep.subr.mxu0 0.0
    %698 = vmatpush1.msra.mxu0 0.0
    %699 = vmatprep.subr.mxu0 0.0
    %700 = vmatpush1.msra.mxu0 0.0
    %701 = vmatprep.mubr.f32.mxu0 0.0
    %702 = vmatmul.mubr.f32.gmra.mrb[0].mxu0 %v635
    %v703 = vpop.f32.mrb[0].mxu0
    %v704 = vadd.f32 0.0, %v703
    %v705 = vpop.f32.mrb[0].mxu0
    %706 = vdwg.mxu0
    %v707 = vadd.f32 %v632, %v704
    %708 = vst [vmem:[#allocation2] sm:$0x1] %v707
    // Predicated region
    $region34: #{tpu_custom_call.1} parent=1 // pred_check
      _
    $region35: #{tpu_custom_call.1} parent=1 // pred_check_branch
      %710 = sbr.rel (0) target = $region37
    $region36: #{tpu_custom_call.1} parent=1 // pred_region
      %s712 = ssub.s32 16, 16
      %713 = vsyncadd [#allocation3], %s712
      %s715 = sshll.u32 [#allocation2], 4
      %s716 = int_to_ptr.vmem [resolvable:$true] %s715
      %718 = dma.vmem_to_hbm [thread:$0]  %s716, 16, %s8, [#allocation3]
    $region37: #{tpu_custom_call.1} parent=1 // pred_fallthru
      _
    // Predicated region
    $region38: #{tpu_custom_call.1} parent=1 // pred_check
      _
    $region39: #{tpu_custom_call.1} parent=1 // pred_check_branch
      %720 = sbr.rel (0) target = $region41
    $region40: #{tpu_custom_call.1} parent=1 // pred_region
      %721 = dma.done [#allocation3], 16
    $region41: #{tpu_custom_call.1} parent=1 // pred_fallthru
      _
    %722 = vsyncpa [#allocation3], 1

</llo_original>
